<compile_context>
chip_gen: v6e
topology: v6e:2x2x1
jax: 0.10.0
libtpu: 0.0.40
codegen_flags: <defaults>
</compile_context>

<pallas_src>
import jax
import jax.numpy as jnp
from jax.experimental import pallas as pl
from jax.experimental.pallas import tpu as pltpu


def _vmem_capacity_bytes():
    """Best-effort physical VMEM query; conservative (v7x) fallback."""
    try:
        info = pltpu.get_tpu_info()
        for attr in ("vmem_capacity_bytes", "vmem_size_bytes", "vmem_bytes"):
            v = getattr(info, attr, None)
            if v:
                return int(v)
    except Exception:
        pass
    return 64 << 20  # v7x per-TC VMEM (smallest across generations)


def channel_gate(x, w1_avg, w2_avg, w1_max, w2_max):
    """x: (B, C, H, W). w1_*: (C_red, C); w2_*: (C, C_red) (PyTorch layouts)."""
    b, c, h, w = x.shape
    hw = h * w
    c_red = w1_avg.shape[0]
    itemsize = x.dtype.itemsize

    # ---- lane-dense spatial axis -------------------------------------------
    hw_pad = max(128, ((hw + 127) // 128) * 128)
    inv_hw = 1.0 / float(hw)

    # ---- generation-aware VMEM budget and batch-block size ------------------
    vmem_cap = _vmem_capacity_bytes()
    # Leave headroom for compiler-internal scratch/semaphores; cap large-VMEM
    # generations (v5e/v6e, 128 MiB) at ~110 MiB, v7x (64 MiB) at ~56 MiB.
    vmem_limit = max(32 << 20, min(vmem_cap - (8 << 20), 110 << 20))

    per_elem = c * hw_pad * itemsize                 # one batch element, one copy
    budget = vmem_limit - (6 << 20)                  # weights + scalars + slack
    # ~2 in-bufs + 2 out-bufs + ~2 blocks of in-kernel temporaries.
    bb = max(1, budget // (6 * per_elem))
    bb = max(1, min(bb, int(pl.cdiv(b, 2)), b))      # keep >= 2 grid steps (v7x 2 TCs)
    n_steps = int(pl.cdiv(b, bb))
    b_pad = n_steps * bb

    # ---- reshape / pad input, transpose weights for row-major matmuls -------
    x3 = x.reshape(b, c, hw)
    if b_pad != b or hw_pad != hw:
        x3 = jnp.pad(x3, ((0, b_pad - b), (0, 0), (0, hw_pad - hw)))

    w1a_t = jnp.transpose(w1_avg)                    # (C, C_red)
    w1m_t = jnp.transpose(w1_max)                    # (C, C_red)
    w2a_t = jnp.transpose(w2_avg)                    # (C_red, C)
    w2m_t = jnp.transpose(w2_max)                    # (C_red, C)

    def kernel(x_ref, w1a_ref, w1m_ref, w2a_ref, w2m_ref, o_ref):
        xb = x_ref[...]                              # (Bb, C, HWp), input dtype

        # --- AdaptiveAvgPool2d(1): f32-accumulating spatial sum --------------
        avg = jnp.sum(xb, axis=-1, dtype=jnp.float32) * inv_hw      # (Bb, C)

        # --- AdaptiveMaxPool2d(1): native dtype, mask padded lanes -----------
        if hw_pad != hw:
            lane = jax.lax.broadcasted_iota(jnp.int32, (1, 1, hw_pad), 2)
            xm = jnp.where(lane < hw, xb, jnp.asarray(-jnp.inf, dtype=xb.dtype))
        else:
            xm = xb
        mx = jnp.max(xm, axis=-1).astype(jnp.float32)                # (Bb, C)

        # --- fc_avg / fc_max MLPs, batched over Bb (no concat needed) --------
        h_a = jnp.maximum(
            jnp.dot(avg, w1a_ref[...].astype(jnp.float32),
                    preferred_element_type=jnp.float32), 0.0)        # (Bb, C_red)
        h_m = jnp.maximum(
            jnp.dot(mx, w1m_ref[...].astype(jnp.float32),
                    preferred_element_type=jnp.float32), 0.0)        # (Bb, C_red)
        y = (jnp.dot(h_a, w2a_ref[...].astype(jnp.float32),
                     preferred_element_type=jnp.float32)
             + jnp.dot(h_m, w2m_ref[...].astype(jnp.float32),
                       preferred_element_type=jnp.float32))          # (Bb, C)

        # --- sigmoid gate, broadcast over spatial, scale in input dtype ------
        gate = jax.nn.sigmoid(y).astype(xb.dtype)                    # (Bb, C)
        o_ref[...] = xb * gate[:, :, None]

    grid_spec = pltpu.PrefetchScalarGridSpec(
        num_scalar_prefetch=0,
        grid=(n_steps,),
        in_specs=[
            pl.BlockSpec((bb, c, hw_pad), lambda i: (i, 0, 0)),   # x batch block
            pl.BlockSpec((c, c_red), lambda i: (0, 0)),           # W1_avg^T (resident)
            pl.BlockSpec((c, c_red), lambda i: (0, 0)),           # W1_max^T (resident)
            pl.BlockSpec((c_red, c), lambda i: (0, 0)),           # W2_avg^T (resident)
            pl.BlockSpec((c_red, c), lambda i: (0, 0)),           # W2_max^T (resident)
        ],
        out_specs=pl.BlockSpec((bb, c, hw_pad), lambda i: (i, 0, 0)),
    )

    # Memory-bound hint for the XLA scheduler around this custom call.
    weight_bytes = 4 * c * c_red * jnp.dtype(w1_avg.dtype).itemsize
    cost = pl.CostEstimate(
        flops=int(b_pad * (3 * c * hw_pad + 8 * c * c_red)),
        transcendentals=int(b_pad * c),
        bytes_accessed=int(2 * b_pad * c * hw_pad * itemsize + weight_bytes),
    )

    out3 = pl.pallas_call(
        kernel,
        out_shape=jax.ShapeDtypeStruct((b_pad, c, hw_pad), x.dtype),
        grid_spec=grid_spec,
        compiler_params=pltpu.CompilerParams(
            dimension_semantics=("parallel",),
            vmem_limit_bytes=int(vmem_limit),
        ),
        cost_estimate=cost,
    )(x3, w1a_t, w1m_t, w2a_t, w2m_t)

    return out3[:b, :, :hw].reshape(b, c, h, w)


def reference_channel_gate(x, w1_avg, w2_avg, w1_max, w2_max):
    """Plain-JAX reference mirroring the PyTorch forward."""
    xf = x.astype(jnp.float32)
    y_avg = jnp.mean(xf, axis=(2, 3))            # (B, C)
    y_max = jnp.max(xf, axis=(2, 3))             # (B, C)
    y_avg = jnp.maximum(y_avg @ w1_avg.T, 0.0) @ w2_avg.T
    y_max = jnp.maximum(y_max @ w1_max.T, 0.0) @ w2_max.T
    gate = jax.nn.sigmoid(y_avg + y_max)[:, :, None, None]
    return (xf * gate).astype(x.dtype)


if __name__ == "__main__":
    # Small shapes consistent with the module (channel must exceed reduction).
    B, C, H, W = 2, 64, 16, 16
    reduction = 16
    C_red = C // reduction                        # 4

    key = jax.random.PRNGKey(0)
    kx, k1, k2, k3, k4 = jax.random.split(key, 5)

    x = jax.random.normal(kx, (B, C, H, W), dtype=jnp.float32)

    # Deterministic parameter init (PyTorch nn.Linear weight shapes: (out, in)).
    w1_avg = jax.random.normal(k1, (C_red, C), dtype=jnp.float32) * (1.0 / jnp.sqrt(C))
    w2_avg = jax.random.normal(k2, (C, C_red), dtype=jnp.float32) * (1.0 / jnp.sqrt(C_red))
    w1_max = jax.random.normal(k3, (C_red, C), dtype=jnp.float32) * (1.0 / jnp.sqrt(C))
    w2_max = jax.random.normal(k4, (C, C_red), dtype=jnp.float32) * (1.0 / jnp.sqrt(C_red))

    out = channel_gate(x, w1_avg, w2_avg, w1_max, w2_max)
    out = jax.block_until_ready(out)

    ref = reference_channel_gate(x, w1_avg, w2_avg, w1_max, w2_max)
    assert out.shape == (B, C, H, W)
    # f32 end-to-end; small reduction-order differences only.
    assert jnp.allclose(out, ref, atol=1e-5, rtol=1e-5), "mismatch vs reference"

    print("KERNEL_OK")
</pallas_src>

<mosaic_0001>
module attributes {stable_mosaic.version = 11 : i64} {
  func.func @kernel(%arg0: i32, %arg1: memref<1x64x256xf32, #tpu.memory_space<vmem>>, %arg2: memref<64x4xf32, #tpu.memory_space<vmem>>, %arg3: memref<64x4xf32, #tpu.memory_space<vmem>>, %arg4: memref<4x64xf32, #tpu.memory_space<vmem>>, %arg5: memref<4x64xf32, #tpu.memory_space<vmem>>, %arg6: memref<1x64x256xf32, #tpu.memory_space<vmem>>) attributes {dimension_semantics = [#tpu.dimension_semantics<parallel>], iteration_bounds = array<i64: 2>, scalar_prefetch = 0 : i64, scratch_operands = 0 : i64, tpu.core_type = #tpu.core_type<tc>, window_params = [{transform_indices = @transform_0, window_bounds = array<i64: 1, 64, 256>}, {pipeline_mode = #tpu.pipeline_mode<synchronous>, transform_indices = @transform_1, window_bounds = array<i64: 64, 4>}, {pipeline_mode = #tpu.pipeline_mode<synchronous>, transform_indices = @transform_2, window_bounds = array<i64: 64, 4>}, {pipeline_mode = #tpu.pipeline_mode<synchronous>, transform_indices = @transform_3, window_bounds = array<i64: 4, 64>}, {pipeline_mode = #tpu.pipeline_mode<synchronous>, transform_indices = @transform_4, window_bounds = array<i64: 4, 64>}, {transform_indices = @transform_5, window_bounds = array<i64: 1, 64, 256>}]} {
    %c0 = arith.constant 0 : index
    %c0_0 = arith.constant 0 : index
    %c0_1 = arith.constant 0 : index
    %0 = vector.load %arg1[%c0, %c0_0, %c0_1] : memref<1x64x256xf32, #tpu.memory_space<vmem>>, vector<1x64x256xf32>
    %cst = arith.constant dense<0.000000e+00> : vector<1x64xf32>
    %1 = vector.multi_reduction <add>, %0, %cst [2] : vector<1x64x256xf32> to vector<1x64xf32>
    %cst_2 = arith.constant 3.906250e-03 : f32
    %2 = vector.broadcast %cst_2 : f32 to vector<1x64xf32>
    %3 = arith.mulf %1, %2 : vector<1x64xf32>
    %cst_3 = arith.constant dense<0xFF800000> : vector<1x64xf32>
    %4 = vector.multi_reduction <maximumf>, %0, %cst_3 [2] : vector<1x64x256xf32> to vector<1x64xf32>
    %c0_4 = arith.constant 0 : index
    %c0_5 = arith.constant 0 : index
    %5 = vector.load %arg2[%c0_4, %c0_5] : memref<64x4xf32, #tpu.memory_space<vmem>>, vector<64x4xf32>
    %cst_6 = arith.constant dense<0.000000e+00> : vector<1x4xf32>
    %6 = tpu.matmul %3, %5, %cst_6 {dimension_numbers = #tpu.dot_dimension_numbers<[1], [0], [0], [1], [0, 0, 1, 1], [], []>} : vector<1x64xf32>, vector<64x4xf32>, vector<1x4xf32> -> vector<1x4xf32>
    %cst_7 = arith.constant 0.000000e+00 : f32
    %7 = vector.broadcast %cst_7 : f32 to vector<1x4xf32>
    %8 = arith.maximumf %6, %7 : vector<1x4xf32>
    %c0_8 = arith.constant 0 : index
    %c0_9 = arith.constant 0 : index
    %9 = vector.load %arg3[%c0_8, %c0_9] : memref<64x4xf32, #tpu.memory_space<vmem>>, vector<64x4xf32>
    %cst_10 = arith.constant dense<0.000000e+00> : vector<1x4xf32>
    %10 = tpu.matmul %4, %9, %cst_10 {dimension_numbers = #tpu.dot_dimension_numbers<[1], [0], [0], [1], [0, 0, 1, 1], [], []>} : vector<1x64xf32>, vector<64x4xf32>, vector<1x4xf32> -> vector<1x4xf32>
    %cst_11 = arith.constant 0.000000e+00 : f32
    %11 = vector.broadcast %cst_11 : f32 to vector<1x4xf32>
    %12 = arith.maximumf %10, %11 : vector<1x4xf32>
    %c0_12 = arith.constant 0 : index
    %c0_13 = arith.constant 0 : index
    %13 = vector.load %arg4[%c0_12, %c0_13] : memref<4x64xf32, #tpu.memory_space<vmem>>, vector<4x64xf32>
    %cst_14 = arith.constant dense<0.000000e+00> : vector<1x64xf32>
    %14 = tpu.matmul %8, %13, %cst_14 {dimension_numbers = #tpu.dot_dimension_numbers<[1], [0], [0], [1], [0, 0, 1, 1], [], []>} : vector<1x4xf32>, vector<4x64xf32>, vector<1x64xf32> -> vector<1x64xf32>
    %c0_15 = arith.constant 0 : index
    %c0_16 = arith.constant 0 : index
    %15 = vector.load %arg5[%c0_15, %c0_16] : memref<4x64xf32, #tpu.memory_space<vmem>>, vector<4x64xf32>
    %cst_17 = arith.constant dense<0.000000e+00> : vector<1x64xf32>
    %16 = tpu.matmul %12, %15, %cst_17 {dimension_numbers = #tpu.dot_dimension_numbers<[1], [0], [0], [1], [0, 0, 1, 1], [], []>} : vector<1x4xf32>, vector<4x64xf32>, vector<1x64xf32> -> vector<1x64xf32>
    %17 = arith.addf %14, %16 : vector<1x64xf32>
    %18 = arith.negf %17 : vector<1x64xf32>
    %19 = math.exp %18 : vector<1x64xf32>
    %cst_18 = arith.constant 1.000000e+00 : f32
    %20 = vector.broadcast %cst_18 : f32 to vector<1x64xf32>
    %21 = arith.addf %20, %19 : vector<1x64xf32>
    %22 = arith.divf %20, %21 : vector<1x64xf32>
    %23 = vector.shape_cast %22 : vector<1x64xf32> to vector<1x64x1xf32>
    %24 = vector.broadcast %23 : vector<1x64x1xf32> to vector<1x64x256xf32>
    %25 = arith.mulf %0, %24 : vector<1x64x256xf32>
    %c0_19 = arith.constant 0 : index
    %c0_20 = arith.constant 0 : index
    %c0_21 = arith.constant 0 : index
    %26 = vector.load %arg6[%c0_19, %c0_20, %c0_21] : memref<1x64x256xf32, #tpu.memory_space<vmem>>, vector<1x64x256xf32>
    tpu.vector_store %arg6[%c0_19, %c0_20, %c0_21], %25 {strides = array<i32>} : memref<1x64x256xf32, #tpu.memory_space<vmem>>, vector<1x64x256xf32>,
    return
  }
  func.func @transform_0(%arg0: i32) -> (i32, i32, i32) {
    %c0_i32 = arith.constant 0 : i32
    %c0_i32_0 = arith.constant 0 : i32
    %c0_i32_1 = arith.constant 0 : i32
    return %arg0, %c0_i32, %c0_i32_0 : i32, i32, i32
  }
  func.func @transform_1(%arg0: i32) -> (i32, i32) {
    %c0_i32 = arith.constant 0 : i32
    %c0_i32_0 = arith.constant 0 : i32
    %c0_i32_1 = arith.constant 0 : i32
    return %c0_i32, %c0_i32_0 : i32, i32
  }
  func.func @transform_2(%arg0: i32) -> (i32, i32) {
    %c0_i32 = arith.constant 0 : i32
    %c0_i32_0 = arith.constant 0 : i32
    %c0_i32_1 = arith.constant 0 : i32
    return %c0_i32, %c0_i32_0 : i32, i32
  }
  func.func @transform_3(%arg0: i32) -> (i32, i32) {
    %c0_i32 = arith.constant 0 : i32
    %c0_i32_0 = arith.constant 0 : i32
    %c0_i32_1 = arith.constant 0 : i32
    return %c0_i32, %c0_i32_0 : i32, i32
  }
  func.func @transform_4(%arg0: i32) -> (i32, i32) {
    %c0_i32 = arith.constant 0 : i32
    %c0_i32_0 = arith.constant 0 : i32
    %c0_i32_1 = arith.constant 0 : i32
    return %c0_i32, %c0_i32_0 : i32, i32
  }
  func.func @transform_5(%arg0: i32) -> (i32, i32, i32) {
    %c0_i32 = arith.constant 0 : i32
    %c0_i32_0 = arith.constant 0 : i32
    %c0_i32_1 = arith.constant 0 : i32
    return %arg0, %c0_i32, %c0_i32_0 : i32, i32, i32
  }
}

</mosaic_0001>

<llo_original>
// kernel: tpu_custom_call.1
$region0: #{tpu_custom_call.1}
  #allocation0 [shape = 'u32[]', space=smem, size = 0x4, offset = 0x4, fixed_abs, tag = 'smem constant byte address 0x4 - core index']
  #allocation1 [shape = 'u32[144,128]{1,0:T(1,128)}', space=vmem, size = 0x12000, scoped, tag = 'internal scratch']
  %s0 = inlined_call_operand.hbm [shape: f32[2,64,256], index: 0, kind: input, shape index: {}]
  %s1 = inlined_call_operand.vmem [shape: f32[64,4], index: 1, kind: input, shape index: {}]
  %s2 = inlined_call_operand.vmem [shape: f32[64,4], index: 2, kind: input, shape index: {}]
  %s3 = inlined_call_operand.vmem [shape: f32[4,64], index: 3, kind: input, shape index: {}]
  %s4 = inlined_call_operand.vmem [shape: f32[4,64], index: 4, kind: input, shape index: {}]
  %s5 = inlined_call_operand.hbm [shape: f32[2,64,256], index: 5, kind: output, shape index: {}]
  %s6 = sld [smem:[#allocation0]]
  $region57: #{tpu_custom_call.1} parent=0
    _
  %s8 = ssub.s32 1, %s6
  %s9 = scalar_select 0, %s8, %s6
  $region1: #{tpu_custom_call.1} parent=0
    #allocation2 [shape = 'u8[131072]{0}', space=vmem, size = 0x20000, scoped, tag = 'input window, operand 0']
    #allocation3 [shape = 's32[2]{0}', space=sflag, size = 0x8, scoped, tag = 'scoped memory for tpu_custom_call.1']
    #allocation4 [shape = 's32[2]{0}', space=sflag, size = 0x8, scoped, tag = 'scoped memory for tpu_custom_call.1']
    #allocation5 [shape = 'u8[131072]{0}', space=vmem, size = 0x20000, scoped, tag = 'output window, operand 0']
    %10 = vsyncpa [#allocation3], 0
    %s11 = scalar_lea.sflag [#allocation3], 1
    %12 = vsyncpa %s11, 0
    %13 = vsyncpa [#allocation4], 0
    %s14 = scalar_lea.sflag [#allocation4], 1
    %15 = vsyncpa %s14, 0
    loop: start=0, step=1, limit=4
    $region2: #{tpu_custom_call.1} parent=1 // loop_pre_header
      _
    $region3: #{tpu_custom_call.1} parent=1 // loop_header
      %s17 = sphi 0, %s21
      %p18 = scmp.ge.s32.totalorder %s17, 4
      %s27 = sphi 0, %s29
      %s30 = sphi 0, %s27
      %s31 = sphi 0, %s30
      %s47 = sphi 0, %s31
      %s51 = sphi 0, %s51
      %s53 = sphi 0, %s51
      %s54 = sphi 0, %s53
      %s68 = sphi 0, %s54
      %s72 = sphi 0, %s72
      %s74 = sphi 0, %s72
      %s75 = sphi 0, %s74
      %s89 = sphi 0, %s75
      %s93 = sphi 0, %s93
      %s95 = sphi 0, %s93
      %s96 = sphi 0, %s95
      %s110 = sphi 0, %s96
      %s114 = sphi 0, %s114
      %s116 = sphi 0, %s114
      %s117 = sphi 0, %s116
      %s131 = sphi 0, %s117
      %s137 = sphi 0, %s139
      %s140 = sphi 0, %s137
      %s141 = sphi 0, %s140
      %s157 = sphi 0, %s141
    $region4: #{tpu_custom_call.1} parent=1 // loop_header_branch
      %20 = sbr.rel (%p18) target = $region8
    $region5: #{tpu_custom_call.1} parent=1 // loop_body
      %s22 = ssub.s32 %s17, 1
      %s23 = ssub.s32 %s17, 2
      %s24 = sadd.s32 %s17, 1
      %s25 = ssub.s32 %s17, %s24
      %p26 = scmp.eq.s32.totalorder %s25, 0
      %s28 = sadd.s32 %s27, 1
      %s29 = scalar_select %p26, %s27, %s28
      %p32 = pneg %p26
      %p33 = scmp.eq.s32.totalorder %s17, 1
      %p34 = por %p32, %p33
      %p35 = scmp.ne.s32.totalorder %s27, %s30
      %p36 = scmp.eq.s32.totalorder %s17, 0
      %p37 = por %p35, %p36
      %p38 = scmp.ne.s32.totalorder %s27, %s30
      %p39 = scmp.eq.s32.totalorder %s22, 1
      %p40 = por %p38, %p39
      %p41 = scmp.ne.s32.totalorder %s30, %s31
      %p42 = scmp.eq.s32.totalorder %s22, 0
      %p43 = por %p41, %p42
      %p44 = scmp.ne.s32.totalorder %s30, %s31
      %p45 = scmp.eq.s32.totalorder %s23, 1
      %p46 = por %p44, %p45
      %p48 = scmp.ne.s32.totalorder %s31, %s47
      %p49 = scmp.eq.s32.totalorder %s23, 0
      %p50 = por %p48, %p49
      %s52 = sadd.s32 %s51, 1
      %p55 = scmp.eq.s32.totalorder %s17, 1
      %p56 = scmp.ne.s32.totalorder %s51, %s53
      %p57 = scmp.eq.s32.totalorder %s17, 0
      %p58 = por %p56, %p57
      %p59 = scmp.ne.s32.totalorder %s51, %s53
      %p60 = scmp.eq.s32.totalorder %s22, 1
      %p61 = por %p59, %p60
      %p62 = scmp.ne.s32.totalorder %s53, %s54
      %p63 = scmp.eq.s32.totalorder %s22, 0
      %p64 = por %p62, %p63
      %p65 = scmp.ne.s32.totalorder %s53, %s54
      %p66 = scmp.eq.s32.totalorder %s23, 1
      %p67 = por %p65, %p66
      %p69 = scmp.ne.s32.totalorder %s54, %s68
      %p70 = scmp.eq.s32.totalorder %s23, 0
      %p71 = por %p69, %p70
      %s73 = sadd.s32 %s72, 1
      %p76 = scmp.eq.s32.totalorder %s17, 1
      %p77 = scmp.ne.s32.totalorder %s72, %s74
      %p78 = scmp.eq.s32.totalorder %s17, 0
      %p79 = por %p77, %p78
      %p80 = scmp.ne.s32.totalorder %s72, %s74
      %p81 = scmp.eq.s32.totalorder %s22, 1
      %p82 = por %p80, %p81
      %p83 = scmp.ne.s32.totalorder %s74, %s75
      %p84 = scmp.eq.s32.totalorder %s22, 0
      %p85 = por %p83, %p84
      %p86 = scmp.ne.s32.totalorder %s74, %s75
      %p87 = scmp.eq.s32.totalorder %s23, 1
      %p88 = por %p86, %p87
      %p90 = scmp.ne.s32.totalorder %s75, %s89
      %p91 = scmp.eq.s32.totalorder %s23, 0
      %p92 = por %p90, %p91
      %s94 = sadd.s32 %s93, 1
      %p97 = scmp.eq.s32.totalorder %s17, 1
      %p98 = scmp.ne.s32.totalorder %s93, %s95
      %p99 = scmp.eq.s32.totalorder %s17, 0
      %p100 = por %p98, %p99
      %p101 = scmp.ne.s32.totalorder %s93, %s95
      %p102 = scmp.eq.s32.totalorder %s22, 1
      %p103 = por %p101, %p102
      %p104 = scmp.ne.s32.totalorder %s95, %s96
      %p105 = scmp.eq.s32.totalorder %s22, 0
      %p106 = por %p104, %p105
      %p107 = scmp.ne.s32.totalorder %s95, %s96
      %p108 = scmp.eq.s32.totalorder %s23, 1
      %p109 = por %p107, %p108
      %p111 = scmp.ne.s32.totalorder %s96, %s110
      %p112 = scmp.eq.s32.totalorder %s23, 0
      %p113 = por %p111, %p112
      %s115 = sadd.s32 %s114, 1
      %p118 = scmp.eq.s32.totalorder %s17, 1
      %p119 = scmp.ne.s32.totalorder %s114, %s116
      %p120 = scmp.eq.s32.totalorder %s17, 0
      %p121 = por %p119, %p120
      %p122 = scmp.ne.s32.totalorder %s114, %s116
      %p123 = scmp.eq.s32.totalorder %s22, 1
      %p124 = por %p122, %p123
      %p125 = scmp.ne.s32.totalorder %s116, %s117
      %p126 = scmp.eq.s32.totalorder %s22, 0
      %p127 = por %p125, %p126
      %p128 = scmp.ne.s32.totalorder %s116, %s117
      %p129 = scmp.eq.s32.totalorder %s23, 1
      %p130 = por %p128, %p129
      %p132 = scmp.ne.s32.totalorder %s117, %s131
      %p133 = scmp.eq.s32.totalorder %s23, 0
      %p134 = por %p132, %p133
      %s135 = ssub.s32 %s17, %s24
      %p136 = scmp.eq.s32.totalorder %s135, 0
      %s138 = sadd.s32 %s137, 1
      %s139 = scalar_select %p136, %s137, %s138
      %p142 = pneg %p136
      %p143 = scmp.eq.s32.totalorder %s17, 1
      %p144 = por %p142, %p143
      %p145 = scmp.ne.s32.totalorder %s137, %s140
      %p146 = scmp.eq.s32.totalorder %s17, 0
      %p147 = por %p145, %p146
      %p148 = scmp.ne.s32.totalorder %s137, %s140
      %p149 = scmp.eq.s32.totalorder %s22, 1
      %p150 = por %p148, %p149
      %p151 = scmp.ne.s32.totalorder %s140, %s141
      %p152 = scmp.eq.s32.totalorder %s22, 0
      %p153 = por %p151, %p152
      %p154 = scmp.ne.s32.totalorder %s140, %s141
      %p155 = scmp.eq.s32.totalorder %s23, 1
      %p156 = por %p154, %p155
      %p158 = scmp.ne.s32.totalorder %s141, %s157
      %p159 = scmp.eq.s32.totalorder %s23, 0
      %p160 = por %p158, %p159
      %p161 = scmp.le.s32.totalorder 1, %s17
      %p162 = scmp.lt.s32.totalorder %s17, 3
      %p163 = pnand %p161, %p162
      %p164 = pneg %p163
      // Predicated region
      $region9: #{tpu_custom_call.1} parent=5 // pred_check
        _
      $region10: #{tpu_custom_call.1} parent=5 // pred_check_branch
        %166 = sbr.rel (%p163) target = $region12
      $region11: #{tpu_custom_call.1} parent=5 // pred_region
        %s167 = ssub.s32 %s17, 1
        // Predicated region
        $region13: #{tpu_custom_call.1} parent=11 // pred_check
          %p168 = pneg %p64
        $region14: #{tpu_custom_call.1} parent=11 // pred_check_branch
          %170 = sbr.rel (%p168) target = $region16
        $region15: #{tpu_custom_call.1} parent=11 // pred_region
          _
        $region16: #{tpu_custom_call.1} parent=11 // pred_fallthru
          _
        // Predicated region
        $region17: #{tpu_custom_call.1} parent=11 // pred_check
          %p171 = pneg %p85
        $region18: #{tpu_custom_call.1} parent=11 // pred_check_branch
          %173 = sbr.rel (%p171) target = $region20
        $region19: #{tpu_custom_call.1} parent=11 // pred_region
          _
        $region20: #{tpu_custom_call.1} parent=11 // pred_fallthru
          _
        // Predicated region
        $region21: #{tpu_custom_call.1} parent=11 // pred_check
          %p174 = pneg %p106
        $region22: #{tpu_custom_call.1} parent=11 // pred_check_branch
          %176 = sbr.rel (%p174) target = $region24
        $region23: #{tpu_custom_call.1} parent=11 // pred_region
          _
        $region24: #{tpu_custom_call.1} parent=11 // pred_fallthru
          _
        // Predicated region
        $region25: #{tpu_custom_call.1} parent=11 // pred_check
          %p177 = pneg %p127
        $region26: #{tpu_custom_call.1} parent=11 // pred_check_branch
          %179 = sbr.rel (%p177) target = $region28
        $region27: #{tpu_custom_call.1} parent=11 // pred_region
          _
        $region28: #{tpu_custom_call.1} parent=11 // pred_fallthru
          _
      $region12: #{tpu_custom_call.1} parent=5 // pred_fallthru
        _
      %p180 = scmp.lt.s32.totalorder %s17, 2
      // Predicated region
      $region29: #{tpu_custom_call.1} parent=5 // pred_check
        %p181 = pneg %p180
      $region30: #{tpu_custom_call.1} parent=5 // pred_check_branch
        %183 = sbr.rel (%p181) target = $region32
      $region31: #{tpu_custom_call.1} parent=5 // pred_region
        // Predicated region
        $region33: #{tpu_custom_call.1} parent=31 // pred_check
          %p184 = pneg %p37
        $region34: #{tpu_custom_call.1} parent=31 // pred_check_branch
          %186 = sbr.rel (%p184) target = $region36
        $region35: #{tpu_custom_call.1} parent=31 // pred_region
          %s187 = sand.u32 %s27, 1
          %s188 = scalar_lea.sflag [#allocation3], %s187
          %s189 = sand.u32 %s27, 1
          %s190 = smul.addr %s189, 128
          %s191 = scalar_lea.vmem [#allocation2], %s190
          %s193 = ssub.s32 2048, 2048
          %194 = vsyncadd %s188, %s193
          %s195 = smul.addr %s17, 16
          %s196 = smul.addr %s195, 128
          %s197 = scalar_lea.hbm %s0, %s196
          %s198 = sshll.u32 %s191, 4
          %s199 = int_to_ptr.vmem [resolvable:$true] %s198
          %204 = dma.hbm_to_vmem [thread:$0]  %s197, 2048, %s199, %s188, 256, 256, 16
        $region36: #{tpu_custom_call.1} parent=31 // pred_fallthru
          _
      $region32: #{tpu_custom_call.1} parent=5 // pred_fallthru
        _
      %p205 = scmp.le.s32.totalorder 1, %s17
      %p206 = scmp.lt.s32.totalorder %s17, 3
      %p207 = pnand %p205, %p206
      %p208 = pneg %p207
      // Predicated region
      $region37: #{tpu_custom_call.1} parent=5 // pred_check
        _
      $region38: #{tpu_custom_call.1} parent=5 // pred_check_branch
        %210 = sbr.rel (%p207) target = $region40
      $region39: #{tpu_custom_call.1} parent=5 // pred_region
        %s211 = ssub.s32 %s17, 1
        %s212 = sand.u32 %s30, 1
        %s213 = scalar_lea.sflag [#allocation3], %s212
        %s214 = sand.u32 %s30, 1
        %s215 = smul.addr %s214, 128
        %s216 = scalar_lea.vmem [#allocation2], %s215
        // Predicated region
        $region41: #{tpu_custom_call.1} parent=39 // pred_check
          %p217 = pneg %p43
        $region42: #{tpu_custom_call.1} parent=39 // pred_check_branch
          %219 = sbr.rel (%p217) target = $region44
        $region43: #{tpu_custom_call.1} parent=39 // pred_region
          %220 = dma.done %s213, 2048
        $region44: #{tpu_custom_call.1} parent=39 // pred_fallthru
          _
        %s221 = sand.u32 %s30, 1
        %s222 = scalar_lea.sflag [#allocation3], %s221
        %s223 = sand.u32 %s30, 1
        %s224 = smul.addr %s223, 128
        %s225 = scalar_lea.vmem [#allocation2], %s224
        %p226 = pneg %p43
        %p227 = pneg %p40
        %p228 = pneg %p64
        %p229 = pneg %p61
        %p230 = pneg %p85
        %p231 = pneg %p82
        %p232 = pneg %p106
        %p233 = pneg %p103
        %p234 = pneg %p127
        %p235 = pneg %p124
        %p236 = pneg %p153
        %p237 = pneg %p150
        %s238 = sand.u32 %s140, 1
        %s239 = scalar_lea.sflag [#allocation4], %s238
        %s240 = sand.u32 %s140, 1
        %s241 = smul.addr %s240, 128
        %s242 = scalar_lea.vmem [#allocation5], %s241
        %v243 = vld [vmem:[%s216] sm:$0xff]
        %v244 = vld [vmem:[%s216 + $0x8] sm:$0xff]
        %v245 = vld [vmem:[%s216 + $0x10] sm:$0xff]
        %v246 = vld [vmem:[%s216 + $0x18] sm:$0xff]
        %v247 = vld [vmem:[%s216 + $0x20] sm:$0xff]
        %v248 = vld [vmem:[%s216 + $0x28] sm:$0xff]
        %v249 = vld [vmem:[%s216 + $0x30] sm:$0xff]
        %v250 = vld [vmem:[%s216 + $0x38] sm:$0xff]
        %v251 = vld [vmem:[%s216 + $0x40] sm:$0xff]
        %v252 = vld [vmem:[%s216 + $0x48] sm:$0xff]
        %v253 = vld [vmem:[%s216 + $0x50] sm:$0xff]
        %v254 = vld [vmem:[%s216 + $0x58] sm:$0xff]
        %v255 = vld [vmem:[%s216 + $0x60] sm:$0xff]
        %v256 = vld [vmem:[%s216 + $0x68] sm:$0xff]
        %v257 = vld [vmem:[%s216 + $0x70] sm:$0xff]
        %v258 = vld [vmem:[%s216 + $0x78] sm:$0xff]
        %v259 = vadd.f32 %v243, %v244
        %260 = vadd.xlane.f32.xlu0 %v259
        %v261 = vpop.xlane.xlu0 %260
        %v262 = vadd.f32 %v245, %v246
        %263 = vadd.xlane.f32.xlu0 %v262
        %v264 = vpop.xlane.xlu0 %263
        %v265 = vadd.f32 %v247, %v248
        %266 = vadd.xlane.f32.xlu0 %v265
        %v267 = vpop.xlane.xlu0 %266
        %v268 = vadd.f32 %v249, %v250
        %269 = vadd.xlane.f32.xlu0 %v268
        %v270 = vpop.xlane.xlu0 %269
        %v271 = vadd.f32 %v251, %v252
        %272 = vadd.xlane.f32.xlu0 %v271
        %v273 = vpop.xlane.xlu0 %272
        %v274 = vadd.f32 %v253, %v254
        %275 = vadd.xlane.f32.xlu0 %v274
        %v276 = vpop.xlane.xlu0 %275
        %v277 = vadd.f32 %v255, %v256
        %278 = vadd.xlane.f32.xlu0 %v277
        %v279 = vpop.xlane.xlu0 %278
        %v280 = vadd.f32 %v257, %v258
        %281 = vadd.xlane.f32.xlu0 %v280
        %v282 = vpop.xlane.xlu0 %281
        %v283 = vmul.f32 %v261, 0.00390625
        %v284 = vmul.f32 %v264, 0.00390625
        %v285 = vmul.f32 %v267, 0.00390625
        %v286 = vmul.f32 %v270, 0.00390625
        %v287 = vmul.f32 %v273, 0.00390625
        %v288 = vmul.f32 %v276, 0.00390625
        %v289 = vmul.f32 %v279, 0.00390625
        %v290 = vmul.f32 %v282, 0.00390625
        %v291 = vmax.f32 %v243, %v244
        %292 = vmax.xlane.f32.xlu0 %v291
        %v293 = vpop.xlane.xlu0 %292
        %v294 = vmax.f32 %v245, %v246
        %295 = vmax.xlane.f32.xlu0 %v294
        %v296 = vpop.xlane.xlu0 %295
        %v297 = vmax.f32 %v247, %v248
        %298 = vmax.xlane.f32.xlu0 %v297
        %v299 = vpop.xlane.xlu0 %298
        %v300 = vmax.f32 %v249, %v250
        %301 = vmax.xlane.f32.xlu0 %v300
        %v302 = vpop.xlane.xlu0 %301
        %v303 = vmax.f32 %v251, %v252
        %304 = vmax.xlane.f32.xlu0 %v303
        %v305 = vpop.xlane.xlu0 %304
        %v306 = vmax.f32 %v253, %v254
        %307 = vmax.xlane.f32.xlu0 %v306
        %v308 = vpop.xlane.xlu0 %307
        %v309 = vmax.f32 %v255, %v256
        %310 = vmax.xlane.f32.xlu0 %v309
        %v311 = vpop.xlane.xlu0 %310
        %v312 = vmax.f32 %v257, %v258
        %313 = vmax.xlane.f32.xlu0 %v312
        %v314 = vpop.xlane.xlu0 %313
        %v315 = vld [vmem:[%s1] sm:$0xff]
        %v316 = vld [vmem:[%s1 + $0x8] sm:$0xff]
        %v317 = vld [vmem:[%s1 + $0x10] sm:$0xff]
        %v318 = vld [vmem:[%s1 + $0x18] sm:$0xff]
        %v319 = vld [vmem:[%s1 + $0x20] sm:$0xff]
        %v320 = vld [vmem:[%s1 + $0x28] sm:$0xff]
        %v321 = vld [vmem:[%s1 + $0x30] sm:$0xff]
        %v322 = vld [vmem:[%s1 + $0x38] sm:$0xff]
        %v331 = vlaneseq
        %v332 = vand.u32 %v331, 127
        %v333 = vlaneseq
        %v334 = vshrl.u32 %v333, 7
        %v335 = vsub.s32 %v332, %v334
        %v336 = vrot.slane %v283, %v335
        %v337 = vadd.s32 %v332, 4294967288
        %v338 = vlaneseq
        %v339 = vshrl.u32 %v338, 7
        %v340 = vsub.s32 %v337, %v339
        %v341 = vrot.slane %v284, %v340
        %vm342 = vcmask 130112
        %v343 = vsel %vm342, %v341, %v336
        %v344 = vadd.s32 %v332, 4294967280
        %v345 = vlaneseq
        %v346 = vshrl.u32 %v345, 7
        %v347 = vsub.s32 %v344, %v346
        %v348 = vrot.slane %v285, %v347
        %vm349 = vcmask 195712
        %v350 = vsel %vm349, %v348, %v343
        %v351 = vadd.s32 %v332, 4294967272
        %v352 = vlaneseq
        %v353 = vshrl.u32 %v352, 7
        %v354 = vsub.s32 %v351, %v353
        %v355 = vrot.slane %v286, %v354
        %vm356 = vcmask 261312
        %v357 = vsel %vm356, %v355, %v350
        %v358 = vadd.s32 %v332, 4294967264
        %v359 = vlaneseq
        %v360 = vshrl.u32 %v359, 7
        %v361 = vsub.s32 %v358, %v360
        %v362 = vrot.slane %v287, %v361
        %vm363 = vcmask 326912
        %v364 = vsel %vm363, %v362, %v357
        %v365 = vadd.s32 %v332, 4294967256
        %v366 = vlaneseq
        %v367 = vshrl.u32 %v366, 7
        %v368 = vsub.s32 %v365, %v367
        %v369 = vrot.slane %v288, %v368
        %vm370 = vcmask 392512
        %v371 = vsel %vm370, %v369, %v364
        %v372 = vadd.s32 %v332, 4294967248
        %v373 = vlaneseq
        %v374 = vshrl.u32 %v373, 7
        %v375 = vsub.s32 %v372, %v374
        %v376 = vrot.slane %v289, %v375
        %vm377 = vcmask 458112
        %v378 = vsel %vm377, %v376, %v371
        %v379 = vadd.s32 %v332, 4294967240
        %v380 = vlaneseq
        %v381 = vshrl.u32 %v380, 7
        %v382 = vsub.s32 %v379, %v381
        %v383 = vrot.slane %v290, %v382
        %vm384 = vcmask 523712
        %v385 = vsel %vm384, %v383, %v378
        %vm386 = vcmask 523264
        %v387 = vsel %vm386, %v385, 0
        %389 = vmatprep.subr.mxu0 0.0
        %390 = vmatpush1.msra.mxu0 0.0
        %391 = vmatprep.subr.mxu0 0.0
        %392 = vmatpush1.msra.mxu0 0.0
        %393 = vmatprep.subr.mxu0 0.0
        %394 = vmatpush1.msra.mxu0 0.0
        %395 = vmatprep.subr.mxu0 0.0
        %396 = vmatpush1.msra.mxu0 0.0
        %397 = vmatprep.subr.mxu0 0.0
        %398 = vmatpush1.msra.mxu0 0.0
        %399 = vmatprep.subr.mxu0 0.0
        %400 = vmatpush1.msra.mxu0 0.0
        %401 = vmatprep.subr.mxu0 0.0
        %402 = vmatpush1.msra.mxu0 0.0
        %403 = vmatprep.subr.mxu0 0.0
        %404 = vmatpush1.msra.mxu0 0.0
        %405 = vmatprep.subr.mxu0 0.0
        %406 = vmatpush1.msra.mxu0 %v322
        %407 = vmatprep.subr.mxu0 0.0
        %408 = vmatpush1.msra.mxu0 %v321
        %409 = vmatprep.subr.mxu0 0.0
        %410 = vmatpush1.msra.mxu0 %v320
        %411 = vmatprep.subr.mxu0 0.0
        %412 = vmatpush1.msra.mxu0 %v319
        %413 = vmatprep.subr.mxu0 0.0
        %414 = vmatpush1.msra.mxu0 %v318
        %415 = vmatprep.subr.mxu0 0.0
        %416 = vmatpush1.msra.mxu0 %v317
        %417 = vmatprep.subr.mxu0 0.0
        %418 = vmatpush1.msra.mxu0 %v316
        %419 = vmatprep.subr.mxu0 0.0
        %420 = vmatpush1.msra.mxu0 %v315
        %421 = vmatprep.subr.mxu0 0.0
        %422 = vmatpush2.msra.mxu0 0.0
        %423 = vmatprep.subr.mxu0 0.0
        %424 = vmatpush2.msra.mxu0 0.0
        %425 = vmatprep.subr.mxu0 0.0
        %426 = vmatpush2.msra.mxu0 0.0
        %427 = vmatprep.subr.mxu0 0.0
        %428 = vmatpush2.msra.mxu0 0.0
        %429 = vmatprep.subr.mxu0 0.0
        %430 = vmatpush2.msra.mxu0 0.0
        %431 = vmatprep.subr.mxu0 0.0
        %432 = vmatpush2.msra.mxu0 0.0
        %433 = vmatprep.subr.mxu0 0.0
        %434 = vmatpush2.msra.mxu0 0.0
        %435 = vmatprep.subr.mxu0 0.0
        %436 = vmatpush2.msra.mxu0 0.0
        %437 = vmatprep.subr.mxu0 0.0
        %438 = vmatpush2.msra.mxu0 0.0
        %439 = vmatprep.subr.mxu0 0.0
        %440 = vmatpush2.msra.mxu0 0.0
        %441 = vmatprep.subr.mxu0 0.0
        %442 = vmatpush2.msra.mxu0 0.0
        %443 = vmatprep.subr.mxu0 0.0
        %444 = vmatpush2.msra.mxu0 0.0
        %445 = vmatprep.subr.mxu0 0.0
        %446 = vmatpush2.msra.mxu0 0.0
        %447 = vmatprep.subr.mxu0 0.0
        %448 = vmatpush2.msra.mxu0 0.0
        %449 = vmatprep.subr.mxu0 0.0
        %450 = vmatpush2.msra.mxu0 0.0
        %451 = vmatprep.subr.mxu0 0.0
        %452 = vmatpush2.msra.mxu0 0.0
        %453 = vmatprep.mubr.f32.mxu0 0.0
        %454 = vmatmul.mubr.f32.gmra.mxu0 %v387
        %v455 = vpop.f32.mrf.mxu0
        %v456 = vadd.f32 0.0, %v455
        %v457 = vpop.f32.mrf.mxu0
        %458 = vdwg.mxu0
        %v459 = vmax.f32 %v456, 0.0
        %v460 = vld [vmem:[%s2] sm:$0xff]
        %v461 = vld [vmem:[%s2 + $0x8] sm:$0xff]
        %v462 = vld [vmem:[%s2 + $0x10] sm:$0xff]
        %v463 = vld [vmem:[%s2 + $0x18] sm:$0xff]
        %v464 = vld [vmem:[%s2 + $0x20] sm:$0xff]
        %v465 = vld [vmem:[%s2 + $0x28] sm:$0xff]
        %v466 = vld [vmem:[%s2 + $0x30] sm:$0xff]
        %v467 = vld [vmem:[%s2 + $0x38] sm:$0xff]
        %v476 = vlaneseq
        %v477 = vshrl.u32 %v476, 7
        %v478 = vsub.s32 %v332, %v477
        %v479 = vrot.slane %v293, %v478
        %v480 = vlaneseq
        %v481 = vshrl.u32 %v480, 7
        %v482 = vsub.s32 %v337, %v481
        %v483 = vrot.slane %v296, %v482
        %v484 = vsel %vm342, %v483, %v479
        %v485 = vlaneseq
        %v486 = vshrl.u32 %v485, 7
        %v487 = vsub.s32 %v344, %v486
        %v488 = vrot.slane %v299, %v487
        %v489 = vsel %vm349, %v488, %v484
        %v490 = vlaneseq
        %v491 = vshrl.u32 %v490, 7
        %v492 = vsub.s32 %v351, %v491
        %v493 = vrot.slane %v302, %v492
        %v494 = vsel %vm356, %v493, %v489
        %v495 = vlaneseq
        %v496 = vshrl.u32 %v495, 7
        %v497 = vsub.s32 %v358, %v496
        %v498 = vrot.slane %v305, %v497
        %v499 = vsel %vm363, %v498, %v494
        %v500 = vlaneseq
        %v501 = vshrl.u32 %v500, 7
        %v502 = vsub.s32 %v365, %v501
        %v503 = vrot.slane %v308, %v502
        %v504 = vsel %vm370, %v503, %v499
        %v505 = vlaneseq
        %v506 = vshrl.u32 %v505, 7
        %v507 = vsub.s32 %v372, %v506
        %v508 = vrot.slane %v311, %v507
        %v509 = vsel %vm377, %v508, %v504
        %v510 = vlaneseq
        %v511 = vshrl.u32 %v510, 7
        %v512 = vsub.s32 %v379, %v511
        %v513 = vrot.slane %v314, %v512
        %v514 = vsel %vm384, %v513, %v509
        %v515 = vsel %vm386, %v514, 0
        %517 = vmatprep.subr.mxu0 0.0
        %518 = vmatpush1.msra.mxu0 0.0
        %519 = vmatprep.subr.mxu0 0.0
        %520 = vmatpush1.msra.mxu0 0.0
        %521 = vmatprep.subr.mxu0 0.0
        %522 = vmatpush1.msra.mxu0 0.0
        %523 = vmatprep.subr.mxu0 0.0
        %524 = vmatpush1.msra.mxu0 0.0
        %525 = vmatprep.subr.mxu0 0.0
        %526 = vmatpush1.msra.mxu0 0.0
        %527 = vmatprep.subr.mxu0 0.0
        %528 = vmatpush1.msra.mxu0 0.0
        %529 = vmatprep.subr.mxu0 0.0
        %530 = vmatpush1.msra.mxu0 0.0
        %531 = vmatprep.subr.mxu0 0.0
        %532 = vmatpush1.msra.mxu0 0.0
        %533 = vmatprep.subr.mxu0 0.0
        %534 = vmatpush1.msra.mxu0 %v467
        %535 = vmatprep.subr.mxu0 0.0
        %536 = vmatpush1.msra.mxu0 %v466
        %537 = vmatprep.subr.mxu0 0.0
        %538 = vmatpush1.msra.mxu0 %v465
        %539 = vmatprep.subr.mxu0 0.0
        %540 = vmatpush1.msra.mxu0 %v464
        %541 = vmatprep.subr.mxu0 0.0
        %542 = vmatpush1.msra.mxu0 %v463
        %543 = vmatprep.subr.mxu0 0.0
        %544 = vmatpush1.msra.mxu0 %v462
        %545 = vmatprep.subr.mxu0 0.0
        %546 = vmatpush1.msra.mxu0 %v461
        %547 = vmatprep.subr.mxu0 0.0
        %548 = vmatpush1.msra.mxu0 %v460
        %549 = vmatprep.subr.mxu0 0.0
        %550 = vmatpush2.msra.mxu0 0.0
        %551 = vmatprep.subr.mxu0 0.0
        %552 = vmatpush2.msra.mxu0 0.0
        %553 = vmatprep.subr.mxu0 0.0
        %554 = vmatpush2.msra.mxu0 0.0
        %555 = vmatprep.subr.mxu0 0.0
        %556 = vmatpush2.msra.mxu0 0.0
        %557 = vmatprep.subr.mxu0 0.0
        %558 = vmatpush2.msra.mxu0 0.0
        %559 = vmatprep.subr.mxu0 0.0
        %560 = vmatpush2.msra.mxu0 0.0
        %561 = vmatprep.subr.mxu0 0.0
        %562 = vmatpush2.msra.mxu0 0.0
        %563 = vmatprep.subr.mxu0 0.0
        %564 = vmatpush2.msra.mxu0 0.0
        %565 = vmatprep.subr.mxu0 0.0
        %566 = vmatpush2.msra.mxu0 0.0
        %567 = vmatprep.subr.mxu0 0.0
        %568 = vmatpush2.msra.mxu0 0.0
        %569 = vmatprep.subr.mxu0 0.0
        %570 = vmatpush2.msra.mxu0 0.0
        %571 = vmatprep.subr.mxu0 0.0
        %572 = vmatpush2.msra.mxu0 0.0
        %573 = vmatprep.subr.mxu0 0.0
        %574 = vmatpush2.msra.mxu0 0.0
        %575 = vmatprep.subr.mxu0 0.0
        %576 = vmatpush2.msra.mxu0 0.0
        %577 = vmatprep.subr.mxu0 0.0
        %578 = vmatpush2.msra.mxu0 0.0
        %579 = vmatprep.subr.mxu0 0.0
        %580 = vmatpush2.msra.mxu0 0.0
        %581 = vmatprep.mubr.f32.mxu0 0.0
        %582 = vmatmul.mubr.f32.gmra.mxu0 %v515
        %v583 = vpop.f32.mrf.mxu0
        %v584 = vadd.f32 0.0, %v583
        %v585 = vpop.f32.mrf.mxu0
        %586 = vdwg.mxu0
        %v587 = vmax.f32 %v584, 0.0
        %v588 = vld [vmem:[%s3] sm:$0xf]
        %v589 = vld [vmem:[%s4] sm:$0xf]
        %vm590 = vcmask 31744
        %v592 = vsel %vm590, %v587, 0
        %vm594 = vcmask 1043456
        %v596 = vsel %vm594, %v589, 0
        %598 = vmatprep.subr.mxu0 0.0
        %599 = vmatpush1.msra.mxu0 0.0
        %600 = vmatprep.subr.mxu0 0.0
        %601 = vmatpush1.msra.mxu0 0.0
        %602 = vmatprep.subr.mxu0 0.0
        %603 = vmatpush1.msra.mxu0 0.0
        %604 = vmatprep.subr.mxu0 0.0
        %605 = vmatpush1.msra.mxu0 0.0
        %606 = vmatprep.subr.mxu0 0.0
        %607 = vmatpush1.msra.mxu0 0.0
        %608 = vmatprep.subr.mxu0 0.0
        %609 = vmatpush1.msra.mxu0 0.0
        %610 = vmatprep.subr.mxu0 0.0
        %611 = vmatpush1.msra.mxu0 0.0
        %612 = vmatprep.subr.mxu0 0.0
        %613 = vmatpush1.msra.mxu0 0.0
        %614 = vmatprep.subr.mxu0 0.0
        %615 = vmatpush1.msra.mxu0 0.0
        %616 = vmatprep.subr.mxu0 0.0
        %617 = vmatpush1.msra.mxu0 0.0
        %618 = vmatprep.subr.mxu0 0.0
        %619 = vmatpush1.msra.mxu0 0.0
        %620 = vmatprep.subr.mxu0 0.0
        %621 = vmatpush1.msra.mxu0 0.0
        %622 = vmatprep.subr.mxu0 0.0
        %623 = vmatpush1.msra.mxu0 0.0
        %624 = vmatprep.subr.mxu0 0.0
        %625 = vmatpush1.msra.mxu0 0.0
        %626 = vmatprep.subr.mxu0 0.0
        %627 = vmatpush1.msra.mxu0 0.0
        %628 = vmatprep.subr.mxu0 0.0
        %629 = vmatpush1.msra.mxu0 %v596
        %630 = vmatprep.subr.mxu0 0.0
        %631 = vmatpush2.msra.mxu0 0.0
        %632 = vmatprep.subr.mxu0 0.0
        %633 = vmatpush2.msra.mxu0 0.0
        %634 = vmatprep.subr.mxu0 0.0
        %635 = vmatpush2.msra.mxu0 0.0
        %636 = vmatprep.subr.mxu0 0.0
        %637 = vmatpush2.msra.mxu0 0.0
        %638 = vmatprep.subr.mxu0 0.0
        %639 = vmatpush2.msra.mxu0 0.0
        %640 = vmatprep.subr.mxu0 0.0
        %641 = vmatpush2.msra.mxu0 0.0
        %642 = vmatprep.subr.mxu0 0.0
        %643 = vmatpush2.msra.mxu0 0.0
        %644 = vmatprep.subr.mxu0 0.0
        %645 = vmatpush2.msra.mxu0 0.0
        %646 = vmatprep.subr.mxu0 0.0
        %647 = vmatpush2.msra.mxu0 0.0
        %648 = vmatprep.subr.mxu0 0.0
        %649 = vmatpush2.msra.mxu0 0.0
        %650 = vmatprep.subr.mxu0 0.0
        %651 = vmatpush2.msra.mxu0 0.0
        %652 = vmatprep.subr.mxu0 0.0
        %653 = vmatpush2.msra.mxu0 0.0
        %654 = vmatprep.subr.mxu0 0.0
        %655 = vmatpush2.msra.mxu0 0.0
        %656 = vmatprep.subr.mxu0 0.0
        %657 = vmatpush2.msra.mxu0 0.0
        %658 = vmatprep.subr.mxu0 0.0
        %659 = vmatpush2.msra.mxu0 0.0
        %660 = vmatprep.subr.mxu0 0.0
        %661 = vmatpush2.msra.mxu0 0.0
        %662 = vmatprep.mubr.f32.mxu0 0.0
        %663 = vmatmul.mubr.f32.gmra.mxu0 %v592
        %v664 = vpop.f32.mrf.mxu0
        %v665 = vadd.f32 0.0, %v664
        %v666 = vpop.f32.mrf.mxu0
        %667 = vdwg.mxu0
        %v669 = vsel %vm590, %v459, 0
        %v672 = vsel %vm594, %v588, 0
        %674 = vmatprep.subr.mxu0 0.0
        %675 = vmatpush1.msra.mxu0 0.0
        %676 = vmatprep.subr.mxu0 0.0
        %677 = vmatpush1.msra.mxu0 0.0
        %678 = vmatprep.subr.mxu0 0.0
        %679 = vmatpush1.msra.mxu0 0.0
        %680 = vmatprep.subr.mxu0 0.0
        %681 = vmatpush1.msra.mxu0 0.0
        %682 = vmatprep.subr.mxu0 0.0
        %683 = vmatpush1.msra.mxu0 0.0
        %684 = vmatprep.subr.mxu0 0.0
        %685 = vmatpush1.msra.mxu0 0.0
        %686 = vmatprep.subr.mxu0 0.0
        %687 = vmatpush1.msra.mxu0 0.0
        %688 = vmatprep.subr.mxu0 0.0
        %689 = vmatpush1.msra.mxu0 0.0
        %690 = vmatprep.subr.mxu0 0.0
        %691 = vmatpush1.msra.mxu0 0.0
        %692 = vmatprep.subr.mxu0 0.0
        %693 = vmatpush1.msra.mxu0 0.0
        %694 = vmatprep.subr.mxu0 0.0
        %695 = vmatpush1.msra.mxu0 0.0
        %696 = vmatprep.subr.mxu0 0.0
        %697 = vmatpush1.msra.mxu0 0.0
        %698 = vmatprep.subr.mxu0 0.0
        %699 = vmatpush1.msra.mxu0 0.0
        %700 = vmatprep.subr.mxu0 0.0
        %701 = vmatpush1.msra.mxu0 0.0
        %702 = vmatprep.subr.mxu0 0.0
        %703 = vmatpush1.msra.mxu0 0.0
        %704 = vmatprep.subr.mxu0 0.0
        %705 = vmatpush1.msra.mxu0 %v672
        %706 = vmatprep.subr.mxu0 0.0
        %707 = vmatpush2.msra.mxu0 0.0
        %708 = vmatprep.subr.mxu0 0.0
        %709 = vmatpush2.msra.mxu0 0.0
        %710 = vmatprep.subr.mxu0 0.0
        %711 = vmatpush2.msra.mxu0 0.0
        %712 = vmatprep.subr.mxu0 0.0
        %713 = vmatpush2.msra.mxu0 0.0
        %714 = vmatprep.subr.mxu0 0.0
        %715 = vmatpush2.msra.mxu0 0.0
        %716 = vmatprep.subr.mxu0 0.0
        %717 = vmatpush2.msra.mxu0 0.0
        %718 = vmatprep.subr.mxu0 0.0
        %719 = vmatpush2.msra.mxu0 0.0
        %720 = vmatprep.subr.mxu0 0.0
        %721 = vmatpush2.msra.mxu0 0.0
        %722 = vmatprep.subr.mxu0 0.0
        %723 = vmatpush2.msra.mxu0 0.0
        %724 = vmatprep.subr.mxu0 0.0
        %725 = vmatpush2.msra.mxu0 0.0
        %726 = vmatprep.subr.mxu0 0.0
        %727 = vmatpush2.msra.mxu0 0.0
        %728 = vmatprep.subr.mxu0 0.0
        %729 = vmatpush2.msra.mxu0 0.0
        %730 = vmatprep.subr.mxu0 0.0
        %731 = vmatpush2.msra.mxu0 0.0
        %732 = vmatprep.subr.mxu0 0.0
        %733 = vmatpush2.msra.mxu0 0.0
        %734 = vmatprep.subr.mxu0 0.0
        %735 = vmatpush2.msra.mxu0 0.0
        %736 = vmatprep.subr.mxu0 0.0
        %737 = vmatpush2.msra.mxu0 0.0
        %738 = vmatprep.mubr.f32.mxu0 0.0
        %739 = vmatmul.mubr.f32.gmra.mxu0 %v669
        %v740 = vpop.f32.mrf.mxu0
        %v741 = vadd.f32 %v665, %v740
        %v742 = vpop.f32.mrf.mxu0
        %743 = vdwg.mxu0
        %v744 = vxor.u32 %v741, 2147483648
        %v745 = vmul.f32 %v744, 1.442695
        %v746 = vpow.pop %v745
        %v747 = vadd.f32 %v746, 1.0
        %v748 = vrcp.pop %v747
        %v749 = vmul.f32 1.0, %v748
        %v750 = vlaneseq
        %v751 = vshrl.u32 %v750, 7
        %v752 = vsub.s32 0, %v751
        %v753 = vrot.slane %v749, %v752
        %755 = vbcast.lane.b32.xlu0 %v753, 256
        %v756 = vpop.permute.xlu0 %755
        %s758 = sor.u32 256, 8
        %759 = vbcast.lane.b32.xlu0 %v753, %s758
        %v760 = vpop.permute.xlu0 %759
        %s762 = sor.u32 256, 16
        %763 = vbcast.lane.b32.xlu0 %v753, %s762
        %v764 = vpop.permute.xlu0 %763
        %s766 = sor.u32 256, 24
        %767 = vbcast.lane.b32.xlu0 %v753, %s766
        %v768 = vpop.permute.xlu0 %767
        %s770 = sor.u32 256, 32
        %771 = vbcast.lane.b32.xlu0 %v753, %s770
        %v772 = vpop.permute.xlu0 %771
        %s774 = sor.u32 256, 40
        %775 = vbcast.lane.b32.xlu0 %v753, %s774
        %v776 = vpop.permute.xlu0 %775
        %s778 = sor.u32 256, 48
        %779 = vbcast.lane.b32.xlu0 %v753, %s778
        %v780 = vpop.permute.xlu0 %779
        %s782 = sor.u32 256, 56
        %783 = vbcast.lane.b32.xlu0 %v753, %s782
        %v784 = vpop.permute.xlu0 %783
        %v785 = vmul.f32 %v243, %v756
        %v786 = vmul.f32 %v244, %v756
        %v787 = vmul.f32 %v245, %v760
        %v788 = vmul.f32 %v246, %v760
        %v789 = vmul.f32 %v247, %v764
        %v790 = vmul.f32 %v248, %v764
        %v791 = vmul.f32 %v249, %v768
        %v792 = vmul.f32 %v250, %v768
        %v793 = vmul.f32 %v251, %v772
        %v794 = vmul.f32 %v252, %v772
        %v795 = vmul.f32 %v253, %v776
        %v796 = vmul.f32 %v254, %v776
        %v797 = vmul.f32 %v255, %v780
        %v798 = vmul.f32 %v256, %v780
        %v799 = vmul.f32 %v257, %v784
        %v800 = vmul.f32 %v258, %v784
        %801 = vst [vmem:[%s242] sm:$0xff] %v785
        %802 = vst [vmem:[%s242 + $0x8] sm:$0xff] %v786
        %803 = vst [vmem:[%s242 + $0x10] sm:$0xff] %v787
        %804 = vst [vmem:[%s242 + $0x18] sm:$0xff] %v788
        %805 = vst [vmem:[%s242 + $0x20] sm:$0xff] %v789
        %806 = vst [vmem:[%s242 + $0x28] sm:$0xff] %v790
        %807 = vst [vmem:[%s242 + $0x30] sm:$0xff] %v791
        %808 = vst [vmem:[%s242 + $0x38] sm:$0xff] %v792
        %809 = vst [vmem:[%s242 + $0x40] sm:$0xff] %v793
        %810 = vst [vmem:[%s242 + $0x48] sm:$0xff] %v794
        %811 = vst [vmem:[%s242 + $0x50] sm:$0xff] %v795
        %812 = vst [vmem:[%s242 + $0x58] sm:$0xff] %v796
        %813 = vst [vmem:[%s242 + $0x60] sm:$0xff] %v797
        %814 = vst [vmem:[%s242 + $0x68] sm:$0xff] %v798
        %815 = vst [vmem:[%s242 + $0x70] sm:$0xff] %v799
        %816 = vst [vmem:[%s242 + $0x78] sm:$0xff] %v800
        %s817 = sand.u32 %s140, 1
        %s818 = scalar_lea.sflag [#allocation4], %s817
        %s819 = sand.u32 %s140, 1
        %s820 = smul.addr %s819, 128
        %s821 = scalar_lea.vmem [#allocation5], %s820
        // Predicated region
        $region45: #{tpu_custom_call.1} parent=39 // pred_check
          %p822 = pneg %p150
        $region46: #{tpu_custom_call.1} parent=39 // pred_check_branch
          %824 = sbr.rel (%p822) target = $region48
        $region47: #{tpu_custom_call.1} parent=39 // pred_region
          %s826 = ssub.s32 2048, 2048
          %827 = vsyncadd %s818, %s826
          %s828 = smul.addr %s22, 16
          %s829 = smul.addr %s828, 128
          %s830 = scalar_lea.hbm %s5, %s829
          %s831 = sshll.u32 %s821, 4
          %s832 = int_to_ptr.vmem [resolvable:$true] %s831
          %837 = dma.vmem_to_hbm [thread:$0]  %s832, 2048, %s830, %s818, 256, 256, 16
        $region48: #{tpu_custom_call.1} parent=39 // pred_fallthru
          _
      $region40: #{tpu_custom_call.1} parent=5 // pred_fallthru
        _
      %p838 = scmp.le.s32.totalorder 2, %s17
      // Predicated region
      $region49: #{tpu_custom_call.1} parent=5 // pred_check
        %p839 = pneg %p838
      $region50: #{tpu_custom_call.1} parent=5 // pred_check_branch
        %841 = sbr.rel (%p839) target = $region52
      $region51: #{tpu_custom_call.1} parent=5 // pred_region
        %s842 = ssub.s32 %s17, 2
        // Predicated region
        $region53: #{tpu_custom_call.1} parent=51 // pred_check
          %p843 = pneg %p156
        $region54: #{tpu_custom_call.1} parent=51 // pred_check_branch
          %845 = sbr.rel (%p843) target = $region56
        $region55: #{tpu_custom_call.1} parent=51 // pred_region
          %s846 = sand.u32 %s141, 1
          %s847 = scalar_lea.sflag [#allocation4], %s846
          %s848 = sand.u32 %s141, 1
          %s849 = smul.addr %s848, 128
          %s850 = scalar_lea.vmem [#allocation5], %s849
          %851 = dma.done %s847, 2048
        $region56: #{tpu_custom_call.1} parent=51 // pred_fallthru
          _
      $region52: #{tpu_custom_call.1} parent=5 // pred_fallthru
        _
    $region6: #{tpu_custom_call.1} parent=1 // loop_footer
      %s21 = sadd.s32 1, %s17
    $region7: #{tpu_custom_call.1} parent=1 // loop_footer_branch
      %16 = sbr.rel target = $region3
    $region8: #{tpu_custom_call.1} parent=1 // loop_exit
      _
    %852 = vsyncpa [#allocation3], 1
    %s853 = scalar_lea.sflag [#allocation3], 1
    %854 = vsyncpa %s853, 1
    %855 = vsyncpa [#allocation4], 1
    %s856 = scalar_lea.sflag [#allocation4], 1
    %857 = vsyncpa %s856, 1

</llo_original>
